<compile_context>
chip_gen: v5e
topology: v5e:2x2
jax: 0.10.0
libtpu: 0.0.40
codegen_flags: <defaults>
</compile_context>

<pallas_src>
import functools

import jax
import jax.numpy as jnp
from jax.experimental import pallas as pl
from jax.experimental.pallas import tpu as pltpu


DEGREE = 8  # every ChebyKANLayer in the reference uses degree = 8


# ----------------------------- kernel body ---------------------------------

def _cheby_layer(h, w_ref, basis_ref, in_dim, degree):
    """y[c,o] = sum_{d,i} T_d(tanh(h))[c,i] * W[d*in_dim + i, o].

    The basis [T_0 | T_1 | ... | T_degree] (degree-major along lanes) is
    staged into `basis_ref` and contracted with the flat ((D+1)*I, O) weight
    in ONE MXU dot of depth K = (degree+1)*in_dim.

    h         : (C, in_dim) activations (values)
    w_ref     : ((degree+1)*in_dim, O) VMEM ref, degree-major flat layout
    basis_ref : (C, >= (degree+1)*in_dim) VMEM scratch
    """
    k = (degree + 1) * in_dim
    dt = basis_ref.dtype
    t = jnp.tanh(h)                                   # |t| <= 1
    two_t = t + t                                     # hoisted out of the loop
    basis_ref[:, 0:in_dim] = jnp.ones_like(t).astype(dt)       # T_0
    basis_ref[:, in_dim:2 * in_dim] = t.astype(dt)              # T_1
    t_prev, t_cur = jnp.ones_like(t), t
    for d in range(1, degree):                        # static, unrolled
        t_next = two_t * t_cur - t_prev               # T_{d+1} = 2 t T_d - T_{d-1}
        basis_ref[:, (d + 1) * in_dim:(d + 2) * in_dim] = t_next.astype(dt)
        t_prev, t_cur = t_cur, t_next
    return jnp.dot(basis_ref[:, :k], w_ref[...],
                   preferred_element_type=jnp.float32)           # (C, O)


def _layer_norm(h, gamma, beta, eps=1e-5):
    """torch.nn.LayerNorm over the last axis (biased variance, eps=1e-5)."""
    mean = jnp.mean(h, axis=-1, keepdims=True)
    centered = h - mean
    var = jnp.mean(centered * centered, axis=-1, keepdims=True)
    inv = jax.lax.rsqrt(var + eps)
    return centered * inv * gamma + beta


def chebykan_fused_kernel(x_ref, w1_ref, w2_ref, w3_ref,
                          g1_ref, b1_ref, g2_ref, b2_ref,
                          out_ref, basis_ref, *, degree, chunk):
    in_dim = x_ref.shape[1]
    hidden = g1_ref.shape[-1]
    n_chunks = x_ref.shape[0] // chunk

    def body(c, carry):
        row = pl.multiple_of(c * chunk, chunk)
        h = x_ref[pl.ds(row, chunk), :]                          # (chunk, 2)
        h = _cheby_layer(h, w1_ref, basis_ref, in_dim, degree)   # (chunk, 32)
        h = _layer_norm(h, g1_ref[...], b1_ref[...])
        h = _cheby_layer(h, w2_ref, basis_ref, hidden, degree)   # (chunk, 32)
        h = _layer_norm(h, g2_ref[...], b2_ref[...])
        h = _cheby_layer(h, w3_ref, basis_ref, hidden, degree)   # (chunk, 3)
        out_ref[pl.ds(row, chunk), :] = h.astype(out_ref.dtype)
        return carry

    jax.lax.fori_loop(0, n_chunks, body, 0, unroll=(n_chunks <= 2))


# ------------------------------ wrapper -------------------------------------

def _choose_block_b(B, target=4096):
    """Grid tile: whole batch when small; otherwise a divisor of B giving
    tiles near `target` rows and >= 2 'parallel' steps (feeds both v7x TCs)."""
    if B <= 512:
        return B
    want_steps = max(2, pl.cdiv(B, target))
    for n_steps in range(want_steps, min(B, 4 * want_steps) + 1):
        if B % n_steps == 0:
            return B // n_steps
    return B   # awkward batch size: fall back to a single big tile


def _choose_chunk(block_b, max_chunk=128):
    """Inner row-chunk (<= 128 rows keeps recurrence + basis in vregs);
    must divide block_b."""
    c = min(block_b, max_chunk)
    while block_b % c:
        c -= 1
    return c


def chebykan_forward(x, params, *, block_b=None, chunk=None, use_bf16=False):
    """Fused forward: x (B, 2) -> (B, 3)."""
    w1, w2, w3, g1, b1, g2, b2 = params
    B, in_dim = x.shape
    hidden = g1.shape[-1]
    out_dim = w3.shape[1]
    degree = w1.shape[0] // in_dim - 1

    if block_b is None:
        block_b = _choose_block_b(B)
    assert B % block_b == 0, (B, block_b)
    if chunk is None:
        chunk = _choose_chunk(block_b)
    assert block_b % chunk == 0, (block_b, chunk)

    if use_bf16:  # v6e/v7x MXUs are bf16-native; validate tolerance first.
        w1, w2, w3 = (w.astype(jnp.bfloat16) for w in (w1, w2, w3))
    basis_dtype = w1.dtype

    kernel = functools.partial(chebykan_fused_kernel, degree=degree, chunk=chunk)
    return pl.pallas_call(
        kernel,
        out_shape=jax.ShapeDtypeStruct((B, out_dim), jnp.float32),
        grid=(B // block_b,),
        in_specs=[
            pl.BlockSpec((block_b, in_dim), lambda i: (i, 0)),
            pl.BlockSpec(w1.shape, lambda i: (0, 0)),
            pl.BlockSpec(w2.shape, lambda i: (0, 0)),
            pl.BlockSpec(w3.shape, lambda i: (0, 0)),
            pl.BlockSpec(g1.shape, lambda i: (0, 0)),
            pl.BlockSpec(b1.shape, lambda i: (0, 0)),
            pl.BlockSpec(g2.shape, lambda i: (0, 0)),
            pl.BlockSpec(b2.shape, lambda i: (0, 0)),
        ],
        out_specs=pl.BlockSpec((block_b, out_dim), lambda i: (i, 0)),
        scratch_shapes=[pltpu.VMEM((chunk, (degree + 1) * hidden), basis_dtype)],
        compiler_params=pltpu.CompilerParams(
            dimension_semantics=("parallel",)),
    )(x, w1, w2, w3, g1, b1, g2, b2)


# --------------------------- parameter setup --------------------------------

def init_chebykan_params(key, degree=DEGREE):
    """ChebyKAN: (2->32), LN(32), (32->32), LN(32), (32->3); degree=8.

    cheby_coeffs ~ N(0, 1/(input_dim*(degree+1))), torch layout (I, O, D+1),
    stored for the kernel degree-major flattened as ((D+1)*I, O) so the whole
    degree axis folds into a single MXU contraction.
    """
    layer_dims = [(2, 32), (32, 32), (32, 3)]
    ws = []
    for (in_dim, out_dim) in layer_dims:
        key, kw = jax.random.split(key)
        std = 1.0 / (in_dim * (degree + 1))
        coeffs = std * jax.random.normal(
            kw, (in_dim, out_dim, degree + 1), jnp.float32)   # torch layout
        w = jnp.transpose(coeffs, (2, 0, 1)).reshape((degree + 1) * in_dim,
                                                     out_dim)
        ws.append(w)
    # LayerNorm defaults: weight=1, bias=0 (stored as (1,32) for lane bcast)
    g1 = jnp.ones((1, 32), jnp.float32)
    b1 = jnp.zeros((1, 32), jnp.float32)
    g2 = jnp.ones((1, 32), jnp.float32)
    b2 = jnp.zeros((1, 32), jnp.float32)
    return (ws[0], ws[1], ws[2], g1, b1, g2, b2)


# ------------------------- pure-JAX reference -------------------------------

def chebykan_forward_ref(x, params, degree=DEGREE):
    """Direct transcription of the PyTorch forward (acos/cos formulation)."""
    w1, w2, w3, g1, b1, g2, b2 = params

    def layer(h, w_flat):
        in_dim = h.shape[-1]
        w_dio = w_flat.reshape(degree + 1, in_dim, -1)        # (D+1, I, O)
        coeffs = jnp.transpose(w_dio, (1, 2, 0))              # (I, O, D+1)
        t = jnp.tanh(h)
        theta = jnp.arccos(t)                                 # clip discarded in ref
        d = jnp.arange(degree + 1, dtype=h.dtype)
        basis = jnp.cos(theta[:, :, None] * d)                # (B, I, D+1)
        return jnp.einsum('bid,iod->bo', basis, coeffs)

    def ln(h, g, b, eps=1e-5):
        m = jnp.mean(h, axis=-1, keepdims=True)
        c = h - m
        v = jnp.mean(c * c, axis=-1, keepdims=True)
        return c * jax.lax.rsqrt(v + eps) * g + b

    h = layer(x, w1)
    h = ln(h, g1, b1)
    h = layer(h, w2)
    h = ln(h, g2, b2)
    h = layer(h, w3)
    return h


# --------------------------------- main --------------------------------------

if __name__ == "__main__":
    key = jax.random.PRNGKey(0)
    key, kx, kx2 = jax.random.split(key, 3)

    params = init_chebykan_params(key)

    # ChebyKAN's first layer has input_dim=2 -> x is (batch, 2)
    x = jax.random.normal(kx, (8, 2), jnp.float32)

    fwd = jax.jit(chebykan_forward)
    out = jax.block_until_ready(fwd(x, params))
    ref = chebykan_forward_ref(x, params)

    assert out.shape == (8, 3), out.shape
    assert out.dtype == jnp.float32
    assert bool(jnp.all(jnp.isfinite(out)))
    assert bool(jnp.allclose(out, ref, atol=1e-4, rtol=1e-3)), \
        "Pallas kernel does not match JAX reference (B=8)"

    # Second check exercises the multi-step parallel grid + inner chunk loop.
    x2 = jax.random.normal(kx2, (1024, 2), jnp.float32)
    out2 = jax.block_until_ready(fwd(x2, params))
    ref2 = chebykan_forward_ref(x2, params)
    assert out2.shape == (1024, 3)
    assert bool(jnp.all(jnp.isfinite(out2)))
    assert bool(jnp.allclose(out2, ref2, atol=1e-4, rtol=1e-3)), \
        "Pallas kernel does not match JAX reference (B=1024)"

    print("KERNEL_OK")
</pallas_src>

<mosaic_0001>
module attributes {stable_mosaic.version = 11 : i64} {
  func.func @chebykan_fused_kernel(%arg0: i32, %arg1: memref<8x2xf32, #tpu.memory_space<vmem>>, %arg2: memref<18x32xf32, #tpu.memory_space<vmem>>, %arg3: memref<288x32xf32, #tpu.memory_space<vmem>>, %arg4: memref<288x3xf32, #tpu.memory_space<vmem>>, %arg5: memref<1x32xf32, #tpu.memory_space<vmem>>, %arg6: memref<1x32xf32, #tpu.memory_space<vmem>>, %arg7: memref<1x32xf32, #tpu.memory_space<vmem>>, %arg8: memref<1x32xf32, #tpu.memory_space<vmem>>, %arg9: memref<8x3xf32, #tpu.memory_space<vmem>>, %arg10: memref<8x288xf32, #tpu.memory_space<vmem>>) attributes {dimension_semantics = [#tpu.dimension_semantics<parallel>], iteration_bounds = array<i64: 1>, scalar_prefetch = 0 : i64, scratch_operands = 1 : i64, tpu.core_type = #tpu.core_type<tc>, window_params = [{transform_indices = @transform_0, window_bounds = array<i64: 8, 2>}, {pipeline_mode = #tpu.pipeline_mode<synchronous>, transform_indices = @transform_1, window_bounds = array<i64: 18, 32>}, {pipeline_mode = #tpu.pipeline_mode<synchronous>, transform_indices = @transform_2, window_bounds = array<i64: 288, 32>}, {pipeline_mode = #tpu.pipeline_mode<synchronous>, transform_indices = @transform_3, window_bounds = array<i64: 288, 3>}, {pipeline_mode = #tpu.pipeline_mode<synchronous>, transform_indices = @transform_4, window_bounds = array<i64: 1, 32>}, {pipeline_mode = #tpu.pipeline_mode<synchronous>, transform_indices = @transform_5, window_bounds = array<i64: 1, 32>}, {pipeline_mode = #tpu.pipeline_mode<synchronous>, transform_indices = @transform_6, window_bounds = array<i64: 1, 32>}, {pipeline_mode = #tpu.pipeline_mode<synchronous>, transform_indices = @transform_7, window_bounds = array<i64: 1, 32>}, {transform_indices = @transform_8, window_bounds = array<i64: 8, 3>}]} {
    %c0_i32 = arith.constant 0 : i32
    %c8_i32 = arith.constant 8 : i32
    %0 = arith.muli %c0_i32, %c8_i32 : i32
    %1 = tpu.assume_multiple %0, 8 : i32
    %2 = arith.index_cast %1 : i32 to index
    %c0 = arith.constant 0 : index
    %3 = vector.load %arg1[%2, %c0] : memref<8x2xf32, #tpu.memory_space<vmem>>, vector<8x2xf32>
    %4 = math.tanh %3 : vector<8x2xf32>
    %5 = arith.addf %4, %4 : vector<8x2xf32>
    %cst = arith.constant 1.000000e+00 : f32
    %6 = vector.broadcast %cst : f32 to vector<8x2xf32>
    %c0_0 = arith.constant 0 : index
    %c0_1 = arith.constant 0 : index
    %7 = vector.load %arg10[%c0_0, %c0_1] : memref<8x288xf32, #tpu.memory_space<vmem>>, vector<8x2xf32>
    tpu.vector_store %arg10[%c0_0, %c0_1], %6 {strides = array<i32>} : memref<8x288xf32, #tpu.memory_space<vmem>>, vector<8x2xf32>,
    %c0_2 = arith.constant 0 : index
    %c2 = arith.constant 2 : index
    %8 = vector.load %arg10[%c0_2, %c2] : memref<8x288xf32, #tpu.memory_space<vmem>>, vector<8x2xf32>
    tpu.vector_store %arg10[%c0_2, %c2], %4 {strides = array<i32>} : memref<8x288xf32, #tpu.memory_space<vmem>>, vector<8x2xf32>,
    %cst_3 = arith.constant 1.000000e+00 : f32
    %9 = vector.broadcast %cst_3 : f32 to vector<8x2xf32>
    %10 = arith.mulf %5, %4 : vector<8x2xf32>
    %11 = arith.subf %10, %9 : vector<8x2xf32>
    %c0_4 = arith.constant 0 : index
    %c4 = arith.constant 4 : index
    %12 = vector.load %arg10[%c0_4, %c4] : memref<8x288xf32, #tpu.memory_space<vmem>>, vector<8x2xf32>
    tpu.vector_store %arg10[%c0_4, %c4], %11 {strides = array<i32>} : memref<8x288xf32, #tpu.memory_space<vmem>>, vector<8x2xf32>,
    %13 = arith.mulf %5, %11 : vector<8x2xf32>
    %14 = arith.subf %13, %4 : vector<8x2xf32>
    %c0_5 = arith.constant 0 : index
    %c6 = arith.constant 6 : index
    %15 = vector.load %arg10[%c0_5, %c6] : memref<8x288xf32, #tpu.memory_space<vmem>>, vector<8x2xf32>
    tpu.vector_store %arg10[%c0_5, %c6], %14 {strides = array<i32>} : memref<8x288xf32, #tpu.memory_space<vmem>>, vector<8x2xf32>,
    %16 = arith.mulf %5, %14 : vector<8x2xf32>
    %17 = arith.subf %16, %11 : vector<8x2xf32>
    %c0_6 = arith.constant 0 : index
    %c8 = arith.constant 8 : index
    %18 = vector.load %arg10[%c0_6, %c8] : memref<8x288xf32, #tpu.memory_space<vmem>>, vector<8x2xf32>
    tpu.vector_store %arg10[%c0_6, %c8], %17 {strides = array<i32>} : memref<8x288xf32, #tpu.memory_space<vmem>>, vector<8x2xf32>,
    %19 = arith.mulf %5, %17 : vector<8x2xf32>
    %20 = arith.subf %19, %14 : vector<8x2xf32>
    %c0_7 = arith.constant 0 : index
    %c10 = arith.constant 10 : index
    %21 = vector.load %arg10[%c0_7, %c10] : memref<8x288xf32, #tpu.memory_space<vmem>>, vector<8x2xf32>
    tpu.vector_store %arg10[%c0_7, %c10], %20 {strides = array<i32>} : memref<8x288xf32, #tpu.memory_space<vmem>>, vector<8x2xf32>,
    %22 = arith.mulf %5, %20 : vector<8x2xf32>
    %23 = arith.subf %22, %17 : vector<8x2xf32>
    %c0_8 = arith.constant 0 : index
    %c12 = arith.constant 12 : index
    %24 = vector.load %arg10[%c0_8, %c12] : memref<8x288xf32, #tpu.memory_space<vmem>>, vector<8x2xf32>
    tpu.vector_store %arg10[%c0_8, %c12], %23 {strides = array<i32>} : memref<8x288xf32, #tpu.memory_space<vmem>>, vector<8x2xf32>,
    %25 = arith.mulf %5, %23 : vector<8x2xf32>
    %26 = arith.subf %25, %20 : vector<8x2xf32>
    %c0_9 = arith.constant 0 : index
    %c14 = arith.constant 14 : index
    %27 = vector.load %arg10[%c0_9, %c14] : memref<8x288xf32, #tpu.memory_space<vmem>>, vector<8x2xf32>
    tpu.vector_store %arg10[%c0_9, %c14], %26 {strides = array<i32>} : memref<8x288xf32, #tpu.memory_space<vmem>>, vector<8x2xf32>,
    %28 = arith.mulf %5, %26 : vector<8x2xf32>
    %29 = arith.subf %28, %23 : vector<8x2xf32>
    %c0_10 = arith.constant 0 : index
    %c16 = arith.constant 16 : index
    %30 = vector.load %arg10[%c0_10, %c16] : memref<8x288xf32, #tpu.memory_space<vmem>>, vector<8x2xf32>
    tpu.vector_store %arg10[%c0_10, %c16], %29 {strides = array<i32>} : memref<8x288xf32, #tpu.memory_space<vmem>>, vector<8x2xf32>,
    %c0_11 = arith.constant 0 : index
    %c0_12 = arith.constant 0 : index
    %31 = vector.load %arg10[%c0_11, %c0_12] : memref<8x288xf32, #tpu.memory_space<vmem>>, vector<8x18xf32>
    %c0_13 = arith.constant 0 : index
    %c0_14 = arith.constant 0 : index
    %32 = vector.load %arg2[%c0_13, %c0_14] : memref<18x32xf32, #tpu.memory_space<vmem>>, vector<18x32xf32>
    %cst_15 = arith.constant dense<0.000000e+00> : vector<8x32xf32>
    %33 = tpu.matmul %31, %32, %cst_15 {dimension_numbers = #tpu.dot_dimension_numbers<[1], [0], [0], [1], [0, 0, 1, 1], [], []>} : vector<8x18xf32>, vector<18x32xf32>, vector<8x32xf32> -> vector<8x32xf32>
    %c0_16 = arith.constant 0 : index
    %c0_17 = arith.constant 0 : index
    %34 = vector.load %arg5[%c0_16, %c0_17] : memref<1x32xf32, #tpu.memory_space<vmem>>, vector<1x32xf32>
    %c0_18 = arith.constant 0 : index
    %c0_19 = arith.constant 0 : index
    %35 = vector.load %arg6[%c0_18, %c0_19] : memref<1x32xf32, #tpu.memory_space<vmem>>, vector<1x32xf32>
    %cst_20 = arith.constant dense<0.000000e+00> : vector<8xf32>
    %36 = vector.multi_reduction <add>, %33, %cst_20 [1] : vector<8x32xf32> to vector<8xf32>
    %37 = vector.shape_cast %36 : vector<8xf32> to vector<8x1xf32>
    %cst_21 = arith.constant 3.200000e+01 : f32
    %38 = vector.broadcast %cst_21 : f32 to vector<8x1xf32>
    %39 = arith.divf %37, %38 : vector<8x1xf32>
    %40 = vector.broadcast %39 : vector<8x1xf32> to vector<8x32xf32>
    %41 = arith.subf %33, %40 : vector<8x32xf32>
    %42 = arith.mulf %41, %41 : vector<8x32xf32>
    %cst_22 = arith.constant dense<0.000000e+00> : vector<8xf32>
    %43 = vector.multi_reduction <add>, %42, %cst_22 [1] : vector<8x32xf32> to vector<8xf32>
    %44 = vector.shape_cast %43 : vector<8xf32> to vector<8x1xf32>
    %cst_23 = arith.constant 3.200000e+01 : f32
    %45 = vector.broadcast %cst_23 : f32 to vector<8x1xf32>
    %46 = arith.divf %44, %45 : vector<8x1xf32>
    %cst_24 = arith.constant 9.99999974E-6 : f32
    %47 = vector.broadcast %cst_24 : f32 to vector<8x1xf32>
    %48 = arith.addf %46, %47 : vector<8x1xf32>
    %49 = math.rsqrt %48 : vector<8x1xf32>
    %50 = vector.broadcast %49 : vector<8x1xf32> to vector<8x32xf32>
    %51 = arith.mulf %41, %50 : vector<8x32xf32>
    %52 = vector.broadcast %34 : vector<1x32xf32> to vector<8x32xf32>
    %53 = arith.mulf %51, %52 : vector<8x32xf32>
    %54 = vector.broadcast %35 : vector<1x32xf32> to vector<8x32xf32>
    %55 = arith.addf %53, %54 : vector<8x32xf32>
    %56 = math.tanh %55 : vector<8x32xf32>
    %57 = arith.addf %56, %56 : vector<8x32xf32>
    %cst_25 = arith.constant 1.000000e+00 : f32
    %58 = vector.broadcast %cst_25 : f32 to vector<8x32xf32>
    %c0_26 = arith.constant 0 : index
    %c0_27 = arith.constant 0 : index
    %59 = vector.load %arg10[%c0_26, %c0_27] : memref<8x288xf32, #tpu.memory_space<vmem>>, vector<8x32xf32>
    tpu.vector_store %arg10[%c0_26, %c0_27], %58 {strides = array<i32>} : memref<8x288xf32, #tpu.memory_space<vmem>>, vector<8x32xf32>,
    %c0_28 = arith.constant 0 : index
    %c32 = arith.constant 32 : index
    %60 = vector.load %arg10[%c0_28, %c32] : memref<8x288xf32, #tpu.memory_space<vmem>>, vector<8x32xf32>
    tpu.vector_store %arg10[%c0_28, %c32], %56 {strides = array<i32>} : memref<8x288xf32, #tpu.memory_space<vmem>>, vector<8x32xf32>,
    %cst_29 = arith.constant 1.000000e+00 : f32
    %61 = vector.broadcast %cst_29 : f32 to vector<8x32xf32>
    %62 = arith.mulf %57, %56 : vector<8x32xf32>
    %63 = arith.subf %62, %61 : vector<8x32xf32>
    %c0_30 = arith.constant 0 : index
    %c64 = arith.constant 64 : index
    %64 = vector.load %arg10[%c0_30, %c64] : memref<8x288xf32, #tpu.memory_space<vmem>>, vector<8x32xf32>
    tpu.vector_store %arg10[%c0_30, %c64], %63 {strides = array<i32>} : memref<8x288xf32, #tpu.memory_space<vmem>>, vector<8x32xf32>,
    %65 = arith.mulf %57, %63 : vector<8x32xf32>
    %66 = arith.subf %65, %56 : vector<8x32xf32>
    %c0_31 = arith.constant 0 : index
    %c96 = arith.constant 96 : index
    %67 = vector.load %arg10[%c0_31, %c96] : memref<8x288xf32, #tpu.memory_space<vmem>>, vector<8x32xf32>
    tpu.vector_store %arg10[%c0_31, %c96], %66 {strides = array<i32>} : memref<8x288xf32, #tpu.memory_space<vmem>>, vector<8x32xf32>,
    %68 = arith.mulf %57, %66 : vector<8x32xf32>
    %69 = arith.subf %68, %63 : vector<8x32xf32>
    %c0_32 = arith.constant 0 : index
    %c128 = arith.constant 128 : index
    %70 = vector.load %arg10[%c0_32, %c128] : memref<8x288xf32, #tpu.memory_space<vmem>>, vector<8x32xf32>
    tpu.vector_store %arg10[%c0_32, %c128], %69 {strides = array<i32>} : memref<8x288xf32, #tpu.memory_space<vmem>>, vector<8x32xf32>,
    %71 = arith.mulf %57, %69 : vector<8x32xf32>
    %72 = arith.subf %71, %66 : vector<8x32xf32>
    %c0_33 = arith.constant 0 : index
    %c160 = arith.constant 160 : index
    %73 = vector.load %arg10[%c0_33, %c160] : memref<8x288xf32, #tpu.memory_space<vmem>>, vector<8x32xf32>
    tpu.vector_store %arg10[%c0_33, %c160], %72 {strides = array<i32>} : memref<8x288xf32, #tpu.memory_space<vmem>>, vector<8x32xf32>,
    %74 = arith.mulf %57, %72 : vector<8x32xf32>
    %75 = arith.subf %74, %69 : vector<8x32xf32>
    %c0_34 = arith.constant 0 : index
    %c192 = arith.constant 192 : index
    %76 = vector.load %arg10[%c0_34, %c192] : memref<8x288xf32, #tpu.memory_space<vmem>>, vector<8x32xf32>
    tpu.vector_store %arg10[%c0_34, %c192], %75 {strides = array<i32>} : memref<8x288xf32, #tpu.memory_space<vmem>>, vector<8x32xf32>,
    %77 = arith.mulf %57, %75 : vector<8x32xf32>
    %78 = arith.subf %77, %72 : vector<8x32xf32>
    %c0_35 = arith.constant 0 : index
    %c224 = arith.constant 224 : index
    %79 = vector.load %arg10[%c0_35, %c224] : memref<8x288xf32, #tpu.memory_space<vmem>>, vector<8x32xf32>
    tpu.vector_store %arg10[%c0_35, %c224], %78 {strides = array<i32>} : memref<8x288xf32, #tpu.memory_space<vmem>>, vector<8x32xf32>,
    %80 = arith.mulf %57, %78 : vector<8x32xf32>
    %81 = arith.subf %80, %75 : vector<8x32xf32>
    %c0_36 = arith.constant 0 : index
    %c256 = arith.constant 256 : index
    %82 = vector.load %arg10[%c0_36, %c256] : memref<8x288xf32, #tpu.memory_space<vmem>>, vector<8x32xf32>
    tpu.vector_store %arg10[%c0_36, %c256], %81 {strides = array<i32>} : memref<8x288xf32, #tpu.memory_space<vmem>>, vector<8x32xf32>,
    %c0_37 = arith.constant 0 : index
    %c0_38 = arith.constant 0 : index
    %83 = vector.load %arg10[%c0_37, %c0_38] : memref<8x288xf32, #tpu.memory_space<vmem>>, vector<8x288xf32>
    %c0_39 = arith.constant 0 : index
    %c0_40 = arith.constant 0 : index
    %84 = vector.load %arg3[%c0_39, %c0_40] : memref<288x32xf32, #tpu.memory_space<vmem>>, vector<288x32xf32>
    %cst_41 = arith.constant dense<0.000000e+00> : vector<8x32xf32>
    %85 = tpu.matmul %83, %84, %cst_41 {dimension_numbers = #tpu.dot_dimension_numbers<[1], [0], [0], [1], [0, 0, 1, 1], [], []>} : vector<8x288xf32>, vector<288x32xf32>, vector<8x32xf32> -> vector<8x32xf32>
    %c0_42 = arith.constant 0 : index
    %c0_43 = arith.constant 0 : index
    %86 = vector.load %arg7[%c0_42, %c0_43] : memref<1x32xf32, #tpu.memory_space<vmem>>, vector<1x32xf32>
    %c0_44 = arith.constant 0 : index
    %c0_45 = arith.constant 0 : index
    %87 = vector.load %arg8[%c0_44, %c0_45] : memref<1x32xf32, #tpu.memory_space<vmem>>, vector<1x32xf32>
    %cst_46 = arith.constant dense<0.000000e+00> : vector<8xf32>
    %88 = vector.multi_reduction <add>, %85, %cst_46 [1] : vector<8x32xf32> to vector<8xf32>
    %89 = vector.shape_cast %88 : vector<8xf32> to vector<8x1xf32>
    %cst_47 = arith.constant 3.200000e+01 : f32
    %90 = vector.broadcast %cst_47 : f32 to vector<8x1xf32>
    %91 = arith.divf %89, %90 : vector<8x1xf32>
    %92 = vector.broadcast %91 : vector<8x1xf32> to vector<8x32xf32>
    %93 = arith.subf %85, %92 : vector<8x32xf32>
    %94 = arith.mulf %93, %93 : vector<8x32xf32>
    %cst_48 = arith.constant dense<0.000000e+00> : vector<8xf32>
    %95 = vector.multi_reduction <add>, %94, %cst_48 [1] : vector<8x32xf32> to vector<8xf32>
    %96 = vector.shape_cast %95 : vector<8xf32> to vector<8x1xf32>
    %cst_49 = arith.constant 3.200000e+01 : f32
    %97 = vector.broadcast %cst_49 : f32 to vector<8x1xf32>
    %98 = arith.divf %96, %97 : vector<8x1xf32>
    %cst_50 = arith.constant 9.99999974E-6 : f32
    %99 = vector.broadcast %cst_50 : f32 to vector<8x1xf32>
    %100 = arith.addf %98, %99 : vector<8x1xf32>
    %101 = math.rsqrt %100 : vector<8x1xf32>
    %102 = vector.broadcast %101 : vector<8x1xf32> to vector<8x32xf32>
    %103 = arith.mulf %93, %102 : vector<8x32xf32>
    %104 = vector.broadcast %86 : vector<1x32xf32> to vector<8x32xf32>
    %105 = arith.mulf %103, %104 : vector<8x32xf32>
    %106 = vector.broadcast %87 : vector<1x32xf32> to vector<8x32xf32>
    %107 = arith.addf %105, %106 : vector<8x32xf32>
    %108 = math.tanh %107 : vector<8x32xf32>
    %109 = arith.addf %108, %108 : vector<8x32xf32>
    %cst_51 = arith.constant 1.000000e+00 : f32
    %110 = vector.broadcast %cst_51 : f32 to vector<8x32xf32>
    %c0_52 = arith.constant 0 : index
    %c0_53 = arith.constant 0 : index
    %111 = vector.load %arg10[%c0_52, %c0_53] : memref<8x288xf32, #tpu.memory_space<vmem>>, vector<8x32xf32>
    tpu.vector_store %arg10[%c0_52, %c0_53], %110 {strides = array<i32>} : memref<8x288xf32, #tpu.memory_space<vmem>>, vector<8x32xf32>,
    %c0_54 = arith.constant 0 : index
    %c32_55 = arith.constant 32 : index
    %112 = vector.load %arg10[%c0_54, %c32_55] : memref<8x288xf32, #tpu.memory_space<vmem>>, vector<8x32xf32>
    tpu.vector_store %arg10[%c0_54, %c32_55], %108 {strides = array<i32>} : memref<8x288xf32, #tpu.memory_space<vmem>>, vector<8x32xf32>,
    %cst_56 = arith.constant 1.000000e+00 : f32
    %113 = vector.broadcast %cst_56 : f32 to vector<8x32xf32>
    %114 = arith.mulf %109, %108 : vector<8x32xf32>
    %115 = arith.subf %114, %113 : vector<8x32xf32>
    %c0_57 = arith.constant 0 : index
    %c64_58 = arith.constant 64 : index
    %116 = vector.load %arg10[%c0_57, %c64_58] : memref<8x288xf32, #tpu.memory_space<vmem>>, vector<8x32xf32>
    tpu.vector_store %arg10[%c0_57, %c64_58], %115 {strides = array<i32>} : memref<8x288xf32, #tpu.memory_space<vmem>>, vector<8x32xf32>,
    %117 = arith.mulf %109, %115 : vector<8x32xf32>
    %118 = arith.subf %117, %108 : vector<8x32xf32>
    %c0_59 = arith.constant 0 : index
    %c96_60 = arith.constant 96 : index
    %119 = vector.load %arg10[%c0_59, %c96_60] : memref<8x288xf32, #tpu.memory_space<vmem>>, vector<8x32xf32>
    tpu.vector_store %arg10[%c0_59, %c96_60], %118 {strides = array<i32>} : memref<8x288xf32, #tpu.memory_space<vmem>>, vector<8x32xf32>,
    %120 = arith.mulf %109, %118 : vector<8x32xf32>
    %121 = arith.subf %120, %115 : vector<8x32xf32>
    %c0_61 = arith.constant 0 : index
    %c128_62 = arith.constant 128 : index
    %122 = vector.load %arg10[%c0_61, %c128_62] : memref<8x288xf32, #tpu.memory_space<vmem>>, vector<8x32xf32>
    tpu.vector_store %arg10[%c0_61, %c128_62], %121 {strides = array<i32>} : memref<8x288xf32, #tpu.memory_space<vmem>>, vector<8x32xf32>,
    %123 = arith.mulf %109, %121 : vector<8x32xf32>
    %124 = arith.subf %123, %118 : vector<8x32xf32>
    %c0_63 = arith.constant 0 : index
    %c160_64 = arith.constant 160 : index
    %125 = vector.load %arg10[%c0_63, %c160_64] : memref<8x288xf32, #tpu.memory_space<vmem>>, vector<8x32xf32>
    tpu.vector_store %arg10[%c0_63, %c160_64], %124 {strides = array<i32>} : memref<8x288xf32, #tpu.memory_space<vmem>>, vector<8x32xf32>,
    %126 = arith.mulf %109, %124 : vector<8x32xf32>
    %127 = arith.subf %126, %121 : vector<8x32xf32>
    %c0_65 = arith.constant 0 : index
    %c192_66 = arith.constant 192 : index
    %128 = vector.load %arg10[%c0_65, %c192_66] : memref<8x288xf32, #tpu.memory_space<vmem>>, vector<8x32xf32>
    tpu.vector_store %arg10[%c0_65, %c192_66], %127 {strides = array<i32>} : memref<8x288xf32, #tpu.memory_space<vmem>>, vector<8x32xf32>,
    %129 = arith.mulf %109, %127 : vector<8x32xf32>
    %130 = arith.subf %129, %124 : vector<8x32xf32>
    %c0_67 = arith.constant 0 : index
    %c224_68 = arith.constant 224 : index
    %131 = vector.load %arg10[%c0_67, %c224_68] : memref<8x288xf32, #tpu.memory_space<vmem>>, vector<8x32xf32>
    tpu.vector_store %arg10[%c0_67, %c224_68], %130 {strides = array<i32>} : memref<8x288xf32, #tpu.memory_space<vmem>>, vector<8x32xf32>,
    %132 = arith.mulf %109, %130 : vector<8x32xf32>
    %133 = arith.subf %132, %127 : vector<8x32xf32>
    %c0_69 = arith.constant 0 : index
    %c256_70 = arith.constant 256 : index
    %134 = vector.load %arg10[%c0_69, %c256_70] : memref<8x288xf32, #tpu.memory_space<vmem>>, vector<8x32xf32>
    tpu.vector_store %arg10[%c0_69, %c256_70], %133 {strides = array<i32>} : memref<8x288xf32, #tpu.memory_space<vmem>>, vector<8x32xf32>,
    %c0_71 = arith.constant 0 : index
    %c0_72 = arith.constant 0 : index
    %135 = vector.load %arg10[%c0_71, %c0_72] : memref<8x288xf32, #tpu.memory_space<vmem>>, vector<8x288xf32>
    %c0_73 = arith.constant 0 : index
    %c0_74 = arith.constant 0 : index
    %136 = vector.load %arg4[%c0_73, %c0_74] : memref<288x3xf32, #tpu.memory_space<vmem>>, vector<288x3xf32>
    %cst_75 = arith.constant dense<0.000000e+00> : vector<8x3xf32>
    %137 = tpu.matmul %135, %136, %cst_75 {dimension_numbers = #tpu.dot_dimension_numbers<[1], [0], [0], [1], [0, 0, 1, 1], [], []>} : vector<8x288xf32>, vector<288x3xf32>, vector<8x3xf32> -> vector<8x3xf32>
    %138 = arith.index_cast %1 : i32 to index
    %c0_76 = arith.constant 0 : index
    %139 = vector.load %arg9[%138, %c0_76] : memref<8x3xf32, #tpu.memory_space<vmem>>, vector<8x3xf32>
    tpu.vector_store %arg9[%138, %c0_76], %137 {strides = array<i32>} : memref<8x3xf32, #tpu.memory_space<vmem>>, vector<8x3xf32>,
    %c1_i32 = arith.constant 1 : i32
    return
  }
  func.func @transform_0(%arg0: i32) -> (i32, i32) {
    %c0_i32 = arith.constant 0 : i32
    %c0_i32_0 = arith.constant 0 : i32
    return %arg0, %c0_i32 : i32, i32
  }
  func.func @transform_1(%arg0: i32) -> (i32, i32) {
    %c0_i32 = arith.constant 0 : i32
    %c0_i32_0 = arith.constant 0 : i32
    %c0_i32_1 = arith.constant 0 : i32
    return %c0_i32, %c0_i32_0 : i32, i32
  }
  func.func @transform_2(%arg0: i32) -> (i32, i32) {
    %c0_i32 = arith.constant 0 : i32
    %c0_i32_0 = arith.constant 0 : i32
    %c0_i32_1 = arith.constant 0 : i32
    return %c0_i32, %c0_i32_0 : i32, i32
  }
  func.func @transform_3(%arg0: i32) -> (i32, i32) {
    %c0_i32 = arith.constant 0 : i32
    %c0_i32_0 = arith.constant 0 : i32
    %c0_i32_1 = arith.constant 0 : i32
    return %c0_i32, %c0_i32_0 : i32, i32
  }
  func.func @transform_4(%arg0: i32) -> (i32, i32) {
    %c0_i32 = arith.constant 0 : i32
    %c0_i32_0 = arith.constant 0 : i32
    %c0_i32_1 = arith.constant 0 : i32
    return %c0_i32, %c0_i32_0 : i32, i32
  }
  func.func @transform_5(%arg0: i32) -> (i32, i32) {
    %c0_i32 = arith.constant 0 : i32
    %c0_i32_0 = arith.constant 0 : i32
    %c0_i32_1 = arith.constant 0 : i32
    return %c0_i32, %c0_i32_0 : i32, i32
  }
  func.func @transform_6(%arg0: i32) -> (i32, i32) {
    %c0_i32 = arith.constant 0 : i32
    %c0_i32_0 = arith.constant 0 : i32
    %c0_i32_1 = arith.constant 0 : i32
    return %c0_i32, %c0_i32_0 : i32, i32
  }
  func.func @transform_7(%arg0: i32) -> (i32, i32) {
    %c0_i32 = arith.constant 0 : i32
    %c0_i32_0 = arith.constant 0 : i32
    %c0_i32_1 = arith.constant 0 : i32
    return %c0_i32, %c0_i32_0 : i32, i32
  }
  func.func @transform_8(%arg0: i32) -> (i32, i32) {
    %c0_i32 = arith.constant 0 : i32
    %c0_i32_0 = arith.constant 0 : i32
    return %arg0, %c0_i32 : i32, i32
  }
}

</mosaic_0001>

<llo_original>
// kernel: chebykan_forward.1
$region0: #{chebykan_forward.1}
  #allocation0 [shape = 'u32[]', space=smem, size = 0x4, offset = 0x4, fixed_abs, tag = 'smem constant byte address 0x4 - core index']
  #allocation1 [shape = 'u32[72,128]{1,0:T(1,128)}', space=vmem, size = 0x9000, scoped, tag = 'internal scratch']
  #allocation2 [shape = 'f32[8,288]{1,0:T(8,128)}', space=vmem, size = 0x3000, scoped, tag = 'scratch operand']
  %s0 = inlined_call_operand.vmem [shape: f32[8,2], index: 0, kind: input, shape index: {}]
  %s1 = inlined_call_operand.vmem [shape: f32[18,32], index: 1, kind: input, shape index: {}]
  %s2 = inlined_call_operand.vmem [shape: f32[288,32], index: 2, kind: input, shape index: {}]
  %s3 = inlined_call_operand.vmem [shape: f32[288,3], index: 3, kind: input, shape index: {}]
  %s4 = inlined_call_operand.vmem [shape: f32[1,32], index: 4, kind: input, shape index: {}]
  %s5 = inlined_call_operand.vmem [shape: f32[1,32], index: 5, kind: input, shape index: {}]
  %s6 = inlined_call_operand.vmem [shape: f32[1,32], index: 6, kind: input, shape index: {}]
  %s7 = inlined_call_operand.vmem [shape: f32[1,32], index: 7, kind: input, shape index: {}]
  %s8 = inlined_call_operand.vmem [shape: f32[8,3], index: 8, kind: output, shape index: {}]
  %s9 = sld [smem:[#allocation0]]
  $region42: #{chebykan_forward.1} parent=0
    _
  %s11 = ssub.s32 1, %s9
  %s12 = scalar_select 0, %s11, %s9
  // Predicated region
  $region2: #{chebykan_forward.1} parent=0 // pred_check
    _
  $region3: #{chebykan_forward.1} parent=0 // pred_check_branch
    %14 = sbr.rel (0) target = $region5
  $region4: #{chebykan_forward.1} parent=0 // pred_region
    _
  $region5: #{chebykan_forward.1} parent=0 // pred_fallthru
    _
  // Predicated region
  $region6: #{chebykan_forward.1} parent=0 // pred_check
    _
  $region7: #{chebykan_forward.1} parent=0 // pred_check_branch
    %16 = sbr.rel (0) target = $region9
  $region8: #{chebykan_forward.1} parent=0 // pred_region
    _
  $region9: #{chebykan_forward.1} parent=0 // pred_fallthru
    _
  // Predicated region
  $region10: #{chebykan_forward.1} parent=0 // pred_check
    _
  $region11: #{chebykan_forward.1} parent=0 // pred_check_branch
    %18 = sbr.rel (0) target = $region13
  $region12: #{chebykan_forward.1} parent=0 // pred_region
    _
  $region13: #{chebykan_forward.1} parent=0 // pred_fallthru
    _
  // Predicated region
  $region14: #{chebykan_forward.1} parent=0 // pred_check
    _
  $region15: #{chebykan_forward.1} parent=0 // pred_check_branch
    %20 = sbr.rel (0) target = $region17
  $region16: #{chebykan_forward.1} parent=0 // pred_region
    _
  $region17: #{chebykan_forward.1} parent=0 // pred_fallthru
    _
  // Predicated region
  $region18: #{chebykan_forward.1} parent=0 // pred_check
    _
  $region19: #{chebykan_forward.1} parent=0 // pred_check_branch
    %22 = sbr.rel (0) target = $region21
  $region20: #{chebykan_forward.1} parent=0 // pred_region
    _
  $region21: #{chebykan_forward.1} parent=0 // pred_fallthru
    _
  // Predicated region
  $region22: #{chebykan_forward.1} parent=0 // pred_check
    _
  $region23: #{chebykan_forward.1} parent=0 // pred_check_branch
    %24 = sbr.rel (0) target = $region25
  $region24: #{chebykan_forward.1} parent=0 // pred_region
    _
  $region25: #{chebykan_forward.1} parent=0 // pred_fallthru
    _
  // Predicated region
  $region26: #{chebykan_forward.1} parent=0 // pred_check
    _
  $region27: #{chebykan_forward.1} parent=0 // pred_check_branch
    %26 = sbr.rel (0) target = $region29
  $region28: #{chebykan_forward.1} parent=0 // pred_region
    _
  $region29: #{chebykan_forward.1} parent=0 // pred_fallthru
    _
  // Predicated region
  $region30: #{chebykan_forward.1} parent=0 // pred_check
    _
  $region31: #{chebykan_forward.1} parent=0 // pred_check_branch
    %28 = sbr.rel (0) target = $region33
  $region32: #{chebykan_forward.1} parent=0 // pred_region
    _
  $region33: #{chebykan_forward.1} parent=0 // pred_fallthru
    _
  %v29 = vld [vmem:[%s0] sm:$0xff]
  %v30 = vtanh.pop %v29
  %v31 = vadd.f32 %v30, %v30
  %vm32 = vcmask 15360
  %33 = vst.msk [vmem:[#allocation2] sm:$0xff] %vm32, 1.0
  %35 = vrot.lane.b32.xlu0 %v30, 2
  %v36 = vpop.permute.xlu0 %35
  %vm38 = vcmask 31760
  %39 = vst.msk [vmem:[#allocation2] sm:$0xff] %vm38, %v36
  %v40 = vmul.f32 %v31, %v30
  %v41 = vsub.f32 %v40, 1.0
  %43 = vrot.lane.b32.xlu0 %v41, 4
  %v44 = vpop.permute.xlu0 %43
  %vm46 = vcmask 48160
  %47 = vst.msk [vmem:[#allocation2] sm:$0xff] %vm46, %v44
  %v48 = vmul.f32 %v31, %v41
  %v49 = vsub.f32 %v48, %v30
  %51 = vrot.lane.b32.xlu0 %v49, 6
  %v52 = vpop.permute.xlu0 %51
  %vm54 = vcmask 64560
  %55 = vst.msk [vmem:[#allocation2] sm:$0xff] %vm54, %v52
  %v56 = vmul.f32 %v31, %v49
  %v57 = vsub.f32 %v56, %v41
  %59 = vrot.lane.b32.xlu0 %v57, 8
  %v60 = vpop.permute.xlu0 %59
  %vm62 = vcmask 80960
  %63 = vst.msk [vmem:[#allocation2] sm:$0xff] %vm62, %v60
  %v64 = vmul.f32 %v31, %v57
  %v65 = vsub.f32 %v64, %v49
  %67 = vrot.lane.b32.xlu0 %v65, 10
  %v68 = vpop.permute.xlu0 %67
  %vm70 = vcmask 97360
  %71 = vst.msk [vmem:[#allocation2] sm:$0xff] %vm70, %v68
  %v72 = vmul.f32 %v31, %v65
  %v73 = vsub.f32 %v72, %v57
  %75 = vrot.lane.b32.xlu0 %v73, 12
  %v76 = vpop.permute.xlu0 %75
  %vm78 = vcmask 113760
  %79 = vst.msk [vmem:[#allocation2] sm:$0xff] %vm78, %v76
  %v80 = vmul.f32 %v31, %v73
  %v81 = vsub.f32 %v80, %v65
  %83 = vrot.lane.b32.xlu0 %v81, 14
  %v84 = vpop.permute.xlu0 %83
  %vm86 = vcmask 130160
  %87 = vst.msk [vmem:[#allocation2] sm:$0xff] %vm86, %v84
  %v88 = vmul.f32 %v31, %v81
  %v89 = vsub.f32 %v88, %v73
  %91 = vrot.lane.b32.xlu0 %v89, 16
  %v92 = vpop.permute.xlu0 %91
  %vm94 = vcmask 146560
  %95 = vst.msk [vmem:[#allocation2] sm:$0xff] %vm94, %v92
  %v96 = vld [vmem:[#allocation2] sm:$0xff]
  %v97 = vld [vmem:[%s1] sm:$0xff]
  %v98 = vld [vmem:[%s1 + $0x8] sm:$0xff]
  %v99 = vld [vmem:[%s1 + $0x10] sm:$0x3]
  %vm100 = vcmask 146432
  %v102 = vsel %vm100, %v96, 0
  %vm104 = vcmask 1041408
  %v106 = vsel %vm104, %v99, 0
  %108 = vmatpush.msra.mxu0 0.0
  %109 = vmatpush.msra.mxu0 0.0
  %110 = vmatpush.msra.mxu0 0.0
  %111 = vmatpush.msra.mxu0 0.0
  %112 = vmatpush.msra.mxu0 0.0
  %113 = vmatpush.msra.mxu0 0.0
  %114 = vmatpush.msra.mxu0 0.0
  %115 = vmatpush.msra.mxu0 0.0
  %116 = vmatpush.msra.mxu0 0.0
  %117 = vmatpush.msra.mxu0 0.0
  %118 = vmatpush.msra.mxu0 0.0
  %119 = vmatpush.msra.mxu0 0.0
  %120 = vmatpush.msra.mxu0 0.0
  %121 = vmatpush.msra.mxu0 %v106
  %122 = vmatpush.msra.mxu0 %v98
  %123 = vmatpush.msra.mxu0 %v97
  %124 = vmatmul.f32.gmra.mxu0 %v102
  %v125 = vpop.f32.mrf.mxu0
  %v126 = vadd.f32 0.0, %v125
  %127 = vdwg.mxu0
  %v128 = vld [vmem:[%s4] sm:$0x1]
  %v129 = vld [vmem:[%s5] sm:$0x1]
  %vm130 = vcmask 261120
  %v131 = vsel %vm130, %v126, 0.0
  %132 = vadd.xlane.f32.xlu0 %v131
  %v133 = vpop.xlane.xlu0 %132
  %v134 = vrcp.pop 32.0
  %v135 = vmul.f32 32.0, %v134
  %v136 = vsub.f32 1.0, %v135
  %v137 = vmul.f32 %v134, %v136
  %v138 = vadd.f32 %v134, %v137
  %vm139 = vweird.f32 %v134
  %v140 = vsel %vm139, %v134, %v138
  %v141 = vmul.f32 %v133, %v140
  %v142 = vsub.f32 %v126, %v141
  %v143 = vmul.f32 %v142, %v142
  %v144 = vsel %vm130, %v143, 0.0
  %145 = vadd.xlane.f32.xlu0 %v144
  %v146 = vpop.xlane.xlu0 %145
  %v147 = vmul.f32 %v146, %v140
  %v148 = vadd.f32 %v147, 1e-05
  %v149 = vrsqrt.pop %v148
  %v150 = vmul.f32 %v149, %v148
  %v151 = vmul.f32 %v150, %v149
  %v152 = vmul.f32 0.5, %v151
  %v153 = vsub.f32 1.5, %v152
  %v154 = vmul.f32 %v149, %v153
  %vm155 = vweird.f32 %v148
  %vm156 = vweird.f32 %v149
  %vm157 = vmor %vm155, %vm156
  %v158 = vsel %vm157, %v149, %v154
  %v159 = vmul.f32 %v142, %v158
  %v161 = vperm.slane %v128, 0
  %v163 = vmul.f32 %v159, %v161
  %v165 = vperm.slane %v129, 0
  %v167 = vadd.f32 %v163, %v165
  %v168 = vtanh.pop %v167
  %v169 = vadd.f32 %v168, %v168
  %170 = vst.msk [vmem:[#allocation2] sm:$0xff] %vm130, 1.0
  %172 = vrot.lane.b32.xlu0 %v168, 32
  %v173 = vpop.permute.xlu0 %172
  %vm175 = vcmask 523520
  %176 = vst.msk [vmem:[#allocation2] sm:$0xff] %vm175, %v173
  %v177 = vmul.f32 %v169, %v168
  %v178 = vsub.f32 %v177, 1.0
  %180 = vrot.lane.b32.xlu0 %v178, 64
  %v181 = vpop.permute.xlu0 %180
  %vm183 = vcmask 785920
  %184 = vst.msk [vmem:[#allocation2] sm:$0xff] %vm183, %v181
  %v185 = vmul.f32 %v169, %v178
  %v186 = vsub.f32 %v185, %v168
  %188 = vrot.lane.b32.xlu0 %v186, 96
  %v189 = vpop.permute.xlu0 %188
  %vm191 = vcmask 1048320
  %192 = vst.msk [vmem:[#allocation2] sm:$0xff] %vm191, %v189
  %v193 = vmul.f32 %v169, %v186
  %v194 = vsub.f32 %v193, %v178
  %195 = vst.msk [vmem:[#allocation2 + $0x8] sm:$0xff] %vm130, %v194
  %v196 = vmul.f32 %v169, %v194
  %v197 = vsub.f32 %v196, %v186
  %199 = vrot.lane.b32.xlu0 %v197, 32
  %v200 = vpop.permute.xlu0 %199
  %202 = vst.msk [vmem:[#allocation2 + $0x8] sm:$0xff] %vm175, %v200
  %v203 = vmul.f32 %v169, %v197
  %v204 = vsub.f32 %v203, %v194
  %206 = vrot.lane.b32.xlu0 %v204, 64
  %v207 = vpop.permute.xlu0 %206
  %209 = vst.msk [vmem:[#allocation2 + $0x8] sm:$0xff] %vm183, %v207
  %v210 = vmul.f32 %v169, %v204
  %v211 = vsub.f32 %v210, %v197
  %213 = vrot.lane.b32.xlu0 %v211, 96
  %v214 = vpop.permute.xlu0 %213
  %216 = vst.msk [vmem:[#allocation2 + $0x8] sm:$0xff] %vm191, %v214
  %v217 = vmul.f32 %v169, %v211
  %v218 = vsub.f32 %v217, %v204
  %219 = vst.msk [vmem:[#allocation2 + $0x10] sm:$0xff] %vm130, %v218
  %v220 = vld [vmem:[#allocation2] sm:$0xff]
  %v221 = vld [vmem:[#allocation2 + $0x8] sm:$0xff]
  %v222 = vld [vmem:[#allocation2 + $0x10] sm:$0xff]
  %v223 = vld [vmem:[%s2] sm:$0xff]
  %v224 = vld [vmem:[%s2 + $0x8] sm:$0xff]
  %v225 = vld [vmem:[%s2 + $0x10] sm:$0xff]
  %v226 = vld [vmem:[%s2 + $0x18] sm:$0xff]
  %v227 = vld [vmem:[%s2 + $0x20] sm:$0xff]
  %v228 = vld [vmem:[%s2 + $0x28] sm:$0xff]
  %v229 = vld [vmem:[%s2 + $0x30] sm:$0xff]
  %v230 = vld [vmem:[%s2 + $0x38] sm:$0xff]
  %v231 = vld [vmem:[%s2 + $0x40] sm:$0xff]
  %v232 = vld [vmem:[%s2 + $0x48] sm:$0xff]
  %v233 = vld [vmem:[%s2 + $0x50] sm:$0xff]
  %v234 = vld [vmem:[%s2 + $0x58] sm:$0xff]
  %v235 = vld [vmem:[%s2 + $0x60] sm:$0xff]
  %v236 = vld [vmem:[%s2 + $0x68] sm:$0xff]
  %v237 = vld [vmem:[%s2 + $0x70] sm:$0xff]
  %v238 = vld [vmem:[%s2 + $0x78] sm:$0xff]
  %v239 = vld [vmem:[%s2 + $0x80] sm:$0xff]
  %v240 = vld [vmem:[%s2 + $0x88] sm:$0xff]
  %v241 = vld [vmem:[%s2 + $0x90] sm:$0xff]
  %v242 = vld [vmem:[%s2 + $0x98] sm:$0xff]
  %v243 = vld [vmem:[%s2 + $0xa0] sm:$0xff]
  %v244 = vld [vmem:[%s2 + $0xa8] sm:$0xff]
  %v245 = vld [vmem:[%s2 + $0xb0] sm:$0xff]
  %v246 = vld [vmem:[%s2 + $0xb8] sm:$0xff]
  %v247 = vld [vmem:[%s2 + $0xc0] sm:$0xff]
  %v248 = vld [vmem:[%s2 + $0xc8] sm:$0xff]
  %v249 = vld [vmem:[%s2 + $0xd0] sm:$0xff]
  %v250 = vld [vmem:[%s2 + $0xd8] sm:$0xff]
  %v251 = vld [vmem:[%s2 + $0xe0] sm:$0xff]
  %v252 = vld [vmem:[%s2 + $0xe8] sm:$0xff]
  %v253 = vld [vmem:[%s2 + $0xf0] sm:$0xff]
  %v254 = vld [vmem:[%s2 + $0xf8] sm:$0xff]
  %v255 = vld [vmem:[%s2 + $0x100] sm:$0xff]
  %v256 = vld [vmem:[%s2 + $0x108] sm:$0xff]
  %v257 = vld [vmem:[%s2 + $0x110] sm:$0xff]
  %v258 = vld [vmem:[%s2 + $0x118] sm:$0xff]
  %v260 = vsel %vm130, %v222, 0
  %262 = vmatpush.msra.mxu0 %v238
  %263 = vmatpush.msra.mxu0 %v237
  %264 = vmatpush.msra.mxu0 %v236
  %265 = vmatpush.msra.mxu0 %v235
  %266 = vmatpush.msra.mxu0 %v234
  %267 = vmatpush.msra.mxu0 %v233
  %268 = vmatpush.msra.mxu0 %v232
  %269 = vmatpush.msra.mxu0 %v231
  %270 = vmatpush.msra.mxu0 %v230
  %271 = vmatpush.msra.mxu0 %v229
  %272 = vmatpush.msra.mxu0 %v228
  %273 = vmatpush.msra.mxu0 %v227
  %274 = vmatpush.msra.mxu0 %v226
  %275 = vmatpush.msra.mxu0 %v225
  %276 = vmatpush.msra.mxu0 %v224
  %277 = vmatpush.msra.mxu0 %v223
  %278 = vmatmul.f32.gmra.mxu0 %v220
  %v279 = vpop.f32.mrf.mxu0
  %v280 = vadd.f32 0.0, %v279
  %281 = vdwg.mxu0
  %282 = vmatpush.msra.mxu0 %v254
  %283 = vmatpush.msra.mxu0 %v253
  %284 = vmatpush.msra.mxu0 %v252
  %285 = vmatpush.msra.mxu0 %v251
  %286 = vmatpush.msra.mxu0 %v250
  %287 = vmatpush.msra.mxu0 %v249
  %288 = vmatpush.msra.mxu0 %v248
  %289 = vmatpush.msra.mxu0 %v247
  %290 = vmatpush.msra.mxu0 %v246
  %291 = vmatpush.msra.mxu0 %v245
  %292 = vmatpush.msra.mxu0 %v244
  %293 = vmatpush.msra.mxu0 %v243
  %294 = vmatpush.msra.mxu0 %v242
  %295 = vmatpush.msra.mxu0 %v241
  %296 = vmatpush.msra.mxu0 %v240
  %297 = vmatpush.msra.mxu0 %v239
  %298 = vmatmul.f32.gmra.mxu0 %v221
  %v299 = vpop.f32.mrf.mxu0
  %v300 = vadd.f32 %v280, %v299
  %301 = vdwg.mxu0
  %302 = vmatpush.msra.mxu0 0.0
  %303 = vmatpush.msra.mxu0 0.0
  %304 = vmatpush.msra.mxu0 0.0
  %305 = vmatpush.msra.mxu0 0.0
  %306 = vmatpush.msra.mxu0 0.0
  %307 = vmatpush.msra.mxu0 0.0
  %308 = vmatpush.msra.mxu0 0.0
  %309 = vmatpush.msra.mxu0 0.0
  %310 = vmatpush.msra.mxu0 0.0
  %311 = vmatpush.msra.mxu0 0.0
  %312 = vmatpush.msra.mxu0 0.0
  %313 = vmatpush.msra.mxu0 0.0
  %314 = vmatpush.msra.mxu0 %v258
  %315 = vmatpush.msra.mxu0 %v257
  %316 = vmatpush.msra.mxu0 %v256
  %317 = vmatpush.msra.mxu0 %v255
  %318 = vmatmul.f32.gmra.mxu0 %v260
  %v319 = vpop.f32.mrf.mxu0
  %v320 = vadd.f32 %v300, %v319
  %321 = vdwg.mxu0
  %v322 = vld [vmem:[%s6] sm:$0x1]
  %v323 = vld [vmem:[%s7] sm:$0x1]
  %v324 = vsel %vm130, %v320, 0.0
  %325 = vadd.xlane.f32.xlu0 %v324
  %v326 = vpop.xlane.xlu0 %325
  %v327 = vmul.f32 %v326, %v140
  %v328 = vsub.f32 %v320, %v327
  %v329 = vmul.f32 %v328, %v328
  %v330 = vsel %vm130, %v329, 0.0
  %331 = vadd.xlane.f32.xlu0 %v330
  %v332 = vpop.xlane.xlu0 %331
  %v333 = vmul.f32 %v332, %v140
  %v334 = vadd.f32 %v333, 1e-05
  %v335 = vrsqrt.pop %v334
  %v336 = vmul.f32 %v335, %v334
  %v337 = vmul.f32 %v336, %v335
  %v338 = vmul.f32 0.5, %v337
  %v339 = vsub.f32 1.5, %v338
  %v340 = vmul.f32 %v335, %v339
  %vm341 = vweird.f32 %v334
  %vm342 = vweird.f32 %v335
  %vm343 = vmor %vm341, %vm342
  %v344 = vsel %vm343, %v335, %v340
  %v345 = vmul.f32 %v328, %v344
  %v347 = vperm.slane %v322, 0
  %v349 = vmul.f32 %v345, %v347
  %v351 = vperm.slane %v323, 0
  %v353 = vadd.f32 %v349, %v351
  %v354 = vtanh.pop %v353
  %v355 = vadd.f32 %v354, %v354
  %356 = vst.msk [vmem:[#allocation2] sm:$0xff] %vm130, 1.0
  %358 = vrot.lane.b32.xlu0 %v354, 32
  %v359 = vpop.permute.xlu0 %358
  %361 = vst.msk [vmem:[#allocation2] sm:$0xff] %vm175, %v359
  %v362 = vmul.f32 %v355, %v354
  %v363 = vsub.f32 %v362, 1.0
  %365 = vrot.lane.b32.xlu0 %v363, 64
  %v366 = vpop.permute.xlu0 %365
  %368 = vst.msk [vmem:[#allocation2] sm:$0xff] %vm183, %v366
  %v369 = vmul.f32 %v355, %v363
  %v370 = vsub.f32 %v369, %v354
  %372 = vrot.lane.b32.xlu0 %v370, 96
  %v373 = vpop.permute.xlu0 %372
  %375 = vst.msk [vmem:[#allocation2] sm:$0xff] %vm191, %v373
  %v376 = vmul.f32 %v355, %v370
  %v377 = vsub.f32 %v376, %v363
  %378 = vst.msk [vmem:[#allocation2 + $0x8] sm:$0xff] %vm130, %v377
  %v379 = vmul.f32 %v355, %v377
  %v380 = vsub.f32 %v379, %v370
  %382 = vrot.lane.b32.xlu0 %v380, 32
  %v383 = vpop.permute.xlu0 %382
  %385 = vst.msk [vmem:[#allocation2 + $0x8] sm:$0xff] %vm175, %v383
  %v386 = vmul.f32 %v355, %v380
  %v387 = vsub.f32 %v386, %v377
  %389 = vrot.lane.b32.xlu0 %v387, 64
  %v390 = vpop.permute.xlu0 %389
  %392 = vst.msk [vmem:[#allocation2 + $0x8] sm:$0xff] %vm183, %v390
  %v393 = vmul.f32 %v355, %v387
  %v394 = vsub.f32 %v393, %v380
  %396 = vrot.lane.b32.xlu0 %v394, 96
  %v397 = vpop.permute.xlu0 %396
  %399 = vst.msk [vmem:[#allocation2 + $0x8] sm:$0xff] %vm191, %v397
  %v400 = vmul.f32 %v355, %v394
  %v401 = vsub.f32 %v400, %v387
  %402 = vst.msk [vmem:[#allocation2 + $0x10] sm:$0xff] %vm130, %v401
  %v403 = vld [vmem:[#allocation2] sm:$0xff]
  %v404 = vld [vmem:[#allocation2 + $0x8] sm:$0xff]
  %v405 = vld [vmem:[#allocation2 + $0x10] sm:$0xff]
  %v406 = vld [vmem:[%s3] sm:$0xff]
  %v407 = vld [vmem:[%s3 + $0x8] sm:$0xff]
  %v408 = vld [vmem:[%s3 + $0x10] sm:$0xff]
  %v409 = vld [vmem:[%s3 + $0x18] sm:$0xff]
  %v410 = vld [vmem:[%s3 + $0x20] sm:$0xff]
  %v411 = vld [vmem:[%s3 + $0x28] sm:$0xff]
  %v412 = vld [vmem:[%s3 + $0x30] sm:$0xff]
  %v413 = vld [vmem:[%s3 + $0x38] sm:$0xff]
  %v414 = vld [vmem:[%s3 + $0x40] sm:$0xff]
  %v415 = vld [vmem:[%s3 + $0x48] sm:$0xff]
  %v416 = vld [vmem:[%s3 + $0x50] sm:$0xff]
  %v417 = vld [vmem:[%s3 + $0x58] sm:$0xff]
  %v418 = vld [vmem:[%s3 + $0x60] sm:$0xff]
  %v419 = vld [vmem:[%s3 + $0x68] sm:$0xff]
  %v420 = vld [vmem:[%s3 + $0x70] sm:$0xff]
  %v421 = vld [vmem:[%s3 + $0x78] sm:$0xff]
  %v422 = vld [vmem:[%s3 + $0x80] sm:$0xff]
  %v423 = vld [vmem:[%s3 + $0x88] sm:$0xff]
  %v424 = vld [vmem:[%s3 + $0x90] sm:$0xff]
  %v425 = vld [vmem:[%s3 + $0x98] sm:$0xff]
  %v426 = vld [vmem:[%s3 + $0xa0] sm:$0xff]
  %v427 = vld [vmem:[%s3 + $0xa8] sm:$0xff]
  %v428 = vld [vmem:[%s3 + $0xb0] sm:$0xff]
  %v429 = vld [vmem:[%s3 + $0xb8] sm:$0xff]
  %v430 = vld [vmem:[%s3 + $0xc0] sm:$0xff]
  %v431 = vld [vmem:[%s3 + $0xc8] sm:$0xff]
  %v432 = vld [vmem:[%s3 + $0xd0] sm:$0xff]
  %v433 = vld [vmem:[%s3 + $0xd8] sm:$0xff]
  %v434 = vld [vmem:[%s3 + $0xe0] sm:$0xff]
  %v435 = vld [vmem:[%s3 + $0xe8] sm:$0xff]
  %v436 = vld [vmem:[%s3 + $0xf0] sm:$0xff]
  %v437 = vld [vmem:[%s3 + $0xf8] sm:$0xff]
  %v438 = vld [vmem:[%s3 + $0x100] sm:$0xff]
  %v439 = vld [vmem:[%s3 + $0x108] sm:$0xff]
  %v440 = vld [vmem:[%s3 + $0x110] sm:$0xff]
  %v441 = vld [vmem:[%s3 + $0x118] sm:$0xff]
  %v443 = vsel %vm130, %v405, 0
  %445 = vmatpush.msra.mxu0 %v421
  %446 = vmatpush.msra.mxu0 %v420
  %447 = vmatpush.msra.mxu0 %v419
  %448 = vmatpush.msra.mxu0 %v418
  %449 = vmatpush.msra.mxu0 %v417
  %450 = vmatpush.msra.mxu0 %v416
  %451 = vmatpush.msra.mxu0 %v415
  %452 = vmatpush.msra.mxu0 %v414
  %453 = vmatpush.msra.mxu0 %v413
  %454 = vmatpush.msra.mxu0 %v412
  %455 = vmatpush.msra.mxu0 %v411
  %456 = vmatpush.msra.mxu0 %v410
  %457 = vmatpush.msra.mxu0 %v409
  %458 = vmatpush.msra.mxu0 %v408
  %459 = vmatpush.msra.mxu0 %v407
  %460 = vmatpush.msra.mxu0 %v406
  %461 = vmatmul.f32.gmra.mxu0 %v403
  %v462 = vpop.f32.mrf.mxu0
  %v463 = vadd.f32 0.0, %v462
  %464 = vdwg.mxu0
  %465 = vmatpush.msra.mxu0 %v437
  %466 = vmatpush.msra.mxu0 %v436
  %467 = vmatpush.msra.mxu0 %v435
  %468 = vmatpush.msra.mxu0 %v434
  %469 = vmatpush.msra.mxu0 %v433
  %470 = vmatpush.msra.mxu0 %v432
  %471 = vmatpush.msra.mxu0 %v431
  %472 = vmatpush.msra.mxu0 %v430
  %473 = vmatpush.msra.mxu0 %v429
  %474 = vmatpush.msra.mxu0 %v428
  %475 = vmatpush.msra.mxu0 %v427
  %476 = vmatpush.msra.mxu0 %v426
  %477 = vmatpush.msra.mxu0 %v425
  %478 = vmatpush.msra.mxu0 %v424
  %479 = vmatpush.msra.mxu0 %v423
  %480 = vmatpush.msra.mxu0 %v422
  %481 = vmatmul.f32.gmra.mxu0 %v404
  %v482 = vpop.f32.mrf.mxu0
  %v483 = vadd.f32 %v463, %v482
  %484 = vdwg.mxu0
  %485 = vmatpush.msra.mxu0 0.0
  %486 = vmatpush.msra.mxu0 0.0
  %487 = vmatpush.msra.mxu0 0.0
  %488 = vmatpush.msra.mxu0 0.0
  %489 = vmatpush.msra.mxu0 0.0
  %490 = vmatpush.msra.mxu0 0.0
  %491 = vmatpush.msra.mxu0 0.0
  %492 = vmatpush.msra.mxu0 0.0
  %493 = vmatpush.msra.mxu0 0.0
  %494 = vmatpush.msra.mxu0 0.0
  %495 = vmatpush.msra.mxu0 0.0
  %496 = vmatpush.msra.mxu0 0.0
  %497 = vmatpush.msra.mxu0 %v441
  %498 = vmatpush.msra.mxu0 %v440
  %499 = vmatpush.msra.mxu0 %v439
  %500 = vmatpush.msra.mxu0 %v438
  %501 = vmatmul.f32.gmra.mxu0 %v443
  %v502 = vpop.f32.mrf.mxu0
  %v503 = vadd.f32 %v483, %v502
  %504 = vdwg.mxu0
  %vm505 = vcmask 23552
  %506 = vst.msk [vmem:[%s8] sm:$0xff] %vm505, %v503
  // Predicated region
  $region34: #{chebykan_forward.1} parent=0 // pred_check
    _
  $region35: #{chebykan_forward.1} parent=0 // pred_check_branch
    %508 = sbr.rel (0) target = $region37
  $region36: #{chebykan_forward.1} parent=0 // pred_region
    _
  $region37: #{chebykan_forward.1} parent=0 // pred_fallthru
    _
  // Predicated region
  $region38: #{chebykan_forward.1} parent=0 // pred_check
    _
  $region39: #{chebykan_forward.1} parent=0 // pred_check_branch
    %510 = sbr.rel (0) target = $region41
  $region40: #{chebykan_forward.1} parent=0 // pred_region
    _
  $region41: #{chebykan_forward.1} parent=0 // pred_fallthru
    _

</llo_original>
